<compile_context>
chip_gen: v7x
topology: tpu7x:2x2x1
jax: 0.10.0
libtpu: 0.0.40
codegen_flags: <defaults>
</compile_context>

<pallas_src>
import functools

import jax
import jax.numpy as jnp
from jax.experimental import pallas as pl
from jax.experimental.pallas import tpu as pltpu


def _mlp_kernel(x_ref, w1_ref, b1_ref, w2_ref, b2_ref, o_ref):
    # x_ref : (tile_b, input_size)   -- streamed batch tile
    # w1_ref: (input_size, hidden)   -- VMEM-resident (constant block index)
    # b1_ref: (1, hidden)
    # w2_ref: (hidden, output_size)
    # b2_ref: (1, output_size)
    # o_ref : (tile_b, output_size)  -- unpadded store (mem-bound kernel:
    #                                   masked narrow vst is hidden under DMA)
    h = (
        jnp.dot(x_ref[...], w1_ref[...], preferred_element_type=jnp.float32)
        + b1_ref[...]
    )
    # Dropout(p=0.6) in eval mode == identity.
    h = jnp.maximum(h, 0.0)  # ReLU
    o_ref[...] = (
        jnp.dot(h, w2_ref[...], preferred_element_type=jnp.float32) + b2_ref[...]
    )


@functools.partial(jax.jit, static_argnames=("tile_b",))
def mlp_forward_batched(xb, w1, b1, w2, b2, *, tile_b=512):
    """Batched Pallas forward: xb is (B, input_size) float32.

    Returns (B, output_size) float32.
    Params are expected float32 (constructed that way at init; no per-call cast).
    """
    B, input_size = xb.shape
    hidden_size = w1.shape[1]
    output_size = w2.shape[1]

    # Sublane-friendly batch tile; shrink for small batches so padding waste
    # stays negligible while keeping the grid >= 1 step.
    tile = min(tile_b, pl.cdiv(B, 8) * 8)
    assert tile % 8 == 0, "batch tile must be a multiple of 8 (sublanes)"
    b_pad = pl.cdiv(B, tile) * tile

    # Only pad when actually needed (padding is a full extra HBM pass).
    x_p = xb if b_pad == B else jnp.zeros((b_pad, input_size), xb.dtype).at[:B].set(xb)

    b1_2d = b1.reshape(1, hidden_size)
    b2_2d = b2.reshape(1, output_size)

    grid = (b_pad // tile,)
    out = pl.pallas_call(
        _mlp_kernel,
        out_shape=jax.ShapeDtypeStruct((b_pad, output_size), jnp.float32),
        grid=grid,
        in_specs=[
            # x: one batch tile per grid step.
            pl.BlockSpec((tile, input_size), lambda i: (i, 0)),
            # Weights/biases: constant block index => DMA'd once, VMEM-resident.
            pl.BlockSpec((input_size, hidden_size), lambda i: (0, 0)),
            pl.BlockSpec((1, hidden_size), lambda i: (0, 0)),
            pl.BlockSpec((hidden_size, output_size), lambda i: (0, 0)),
            pl.BlockSpec((1, output_size), lambda i: (0, 0)),
        ],
        # Unpadded output block: last dim equals the full array dim (legal),
        # so writeback bytes = exactly B * output_size * 4.
        out_specs=pl.BlockSpec((tile, output_size), lambda i: (i, 0)),
        compiler_params=pltpu.CompilerParams(
            dimension_semantics=("parallel",),  # v7x: shard tiles across 2 TCs
        ),
    )(x_p, w1, b1_2d, w2, b2_2d)

    return out if b_pad == B else out[:B]


@jax.jit
def _mlp_tiny(x2d, w1, b1, w2, b2):
    # Fused XLA path for tiny batches: pallas dispatch would be pure overhead.
    h = jnp.maximum(x2d @ w1 + b1, 0.0)  # Dropout eval-mode == identity
    return h @ w2 + b2


def mlp_state_encoder(x, w1, b1, w2, b2):
    """Single-sample forward matching the PyTorch module.

    x: any shape; flattened like `view(1, 1, -1)`.
    Returns action_scores of shape (1, 1, output_size), float32.
    """
    x2d = jnp.asarray(x, jnp.float32).reshape(1, -1)
    output_size = w2.shape[1]
    out = _mlp_tiny(x2d, w1, b1, w2, b2)
    return out.reshape(1, 1, output_size)


def _init_params(key, input_size, hidden_size, output_size):
    """Deterministic f32 init mimicking nn.Linear default U[-1/sqrt(fan_in), ..]."""
    k1, k2, k3, k4 = jax.random.split(key, 4)
    lim1 = 1.0 / jnp.sqrt(jnp.float32(input_size))
    lim2 = 1.0 / jnp.sqrt(jnp.float32(hidden_size))
    w1 = jax.random.uniform(k1, (input_size, hidden_size), jnp.float32, -lim1, lim1)
    b1 = jax.random.uniform(k2, (hidden_size,), jnp.float32, -lim1, lim1)
    w2 = jax.random.uniform(k3, (hidden_size, output_size), jnp.float32, -lim2, lim2)
    b2 = jax.random.uniform(k4, (output_size,), jnp.float32, -lim2, lim2)
    return w1, b1, w2, b2


if __name__ == "__main__":
    # FrozenLake-like sizes: 16-dim one-hot state, 32 hidden, 4 actions.
    input_size, hidden_size, output_size = 16, 32, 4

    key = jax.random.PRNGKey(0)
    kx, kb, kr, kp = jax.random.split(key, 4)
    w1, b1, w2, b2 = _init_params(kp, input_size, hidden_size, output_size)

    def ref_fwd(xb):
        return jnp.maximum(xb @ w1 + b1, 0.0) @ w2 + b2

    # --- Batched Pallas path, B a multiple of the tile (no padding copies):
    #     4 grid steps of 64 rows.
    B1 = 256
    xb1 = jax.random.normal(kb, (B1, input_size), jnp.float32)
    out1 = jax.block_until_ready(mlp_forward_batched(xb1, w1, b1, w2, b2, tile_b=64))
    assert out1.shape == (B1, output_size)
    assert jnp.allclose(out1, ref_fwd(xb1), atol=1e-5, rtol=1e-5)

    # --- Batched Pallas path, ragged B (exercises the padding branch).
    B2 = 100
    xb2 = jax.random.normal(kr, (B2, input_size), jnp.float32)
    out2 = jax.block_until_ready(mlp_forward_batched(xb2, w1, b1, w2, b2, tile_b=64))
    assert out2.shape == (B2, output_size)
    assert jnp.allclose(out2, ref_fwd(xb2), atol=1e-5, rtol=1e-5)

    # --- Single-sample path matching the PyTorch forward semantics
    #     (fused XLA fast path; no pallas dispatch for ~1.2 Kflops).
    x = jax.random.normal(kx, (input_size,), jnp.float32)
    scores = jax.block_until_ready(mlp_state_encoder(x, w1, b1, w2, b2))
    ref = ref_fwd(x.reshape(1, -1)).reshape(1, 1, output_size)
    assert scores.shape == (1, 1, output_size)
    assert jnp.allclose(scores, ref, atol=1e-5, rtol=1e-5)

    print("KERNEL_OK")
</pallas_src>

<mosaic_0001>
module attributes {stable_mosaic.version = 11 : i64} {
  func.func @_mlp_kernel(%arg0: i32, %arg1: memref<64x16xf32, #tpu.memory_space<vmem>>, %arg2: memref<16x32xf32, #tpu.memory_space<vmem>>, %arg3: memref<1x32xf32, #tpu.memory_space<vmem>>, %arg4: memref<32x4xf32, #tpu.memory_space<vmem>>, %arg5: memref<1x4xf32, #tpu.memory_space<vmem>>, %arg6: memref<64x4xf32, #tpu.memory_space<vmem>>) attributes {dimension_semantics = [#tpu.dimension_semantics<parallel>], iteration_bounds = array<i64: 4>, scalar_prefetch = 0 : i64, scratch_operands = 0 : i64, tpu.core_type = #tpu.core_type<tc>, window_params = [{transform_indices = @transform_0, window_bounds = array<i64: 64, 16>}, {pipeline_mode = #tpu.pipeline_mode<synchronous>, transform_indices = @transform_1, window_bounds = array<i64: 16, 32>}, {pipeline_mode = #tpu.pipeline_mode<synchronous>, transform_indices = @transform_2, window_bounds = array<i64: 1, 32>}, {pipeline_mode = #tpu.pipeline_mode<synchronous>, transform_indices = @transform_3, window_bounds = array<i64: 32, 4>}, {pipeline_mode = #tpu.pipeline_mode<synchronous>, transform_indices = @transform_4, window_bounds = array<i64: 1, 4>}, {transform_indices = @transform_5, window_bounds = array<i64: 64, 4>}]} {
    %c0 = arith.constant 0 : index
    %c0_0 = arith.constant 0 : index
    %0 = vector.load %arg1[%c0, %c0_0] : memref<64x16xf32, #tpu.memory_space<vmem>>, vector<64x16xf32>
    %c0_1 = arith.constant 0 : index
    %c0_2 = arith.constant 0 : index
    %1 = vector.load %arg2[%c0_1, %c0_2] : memref<16x32xf32, #tpu.memory_space<vmem>>, vector<16x32xf32>
    %cst = arith.constant dense<0.000000e+00> : vector<64x32xf32>
    %2 = tpu.matmul %0, %1, %cst {dimension_numbers = #tpu.dot_dimension_numbers<[1], [0], [0], [1], [0, 0, 1, 1], [], []>} : vector<64x16xf32>, vector<16x32xf32>, vector<64x32xf32> -> vector<64x32xf32>
    %c0_3 = arith.constant 0 : index
    %c0_4 = arith.constant 0 : index
    %3 = vector.load %arg3[%c0_3, %c0_4] : memref<1x32xf32, #tpu.memory_space<vmem>>, vector<1x32xf32>
    %4 = vector.broadcast %3 : vector<1x32xf32> to vector<64x32xf32>
    %5 = arith.addf %2, %4 : vector<64x32xf32>
    %cst_5 = arith.constant 0.000000e+00 : f32
    %6 = vector.broadcast %cst_5 : f32 to vector<64x32xf32>
    %7 = arith.maximumf %5, %6 : vector<64x32xf32>
    %c0_6 = arith.constant 0 : index
    %c0_7 = arith.constant 0 : index
    %8 = vector.load %arg4[%c0_6, %c0_7] : memref<32x4xf32, #tpu.memory_space<vmem>>, vector<32x4xf32>
    %cst_8 = arith.constant dense<0.000000e+00> : vector<64x4xf32>
    %9 = tpu.matmul %7, %8, %cst_8 {dimension_numbers = #tpu.dot_dimension_numbers<[1], [0], [0], [1], [0, 0, 1, 1], [], []>} : vector<64x32xf32>, vector<32x4xf32>, vector<64x4xf32> -> vector<64x4xf32>
    %c0_9 = arith.constant 0 : index
    %c0_10 = arith.constant 0 : index
    %10 = vector.load %arg5[%c0_9, %c0_10] : memref<1x4xf32, #tpu.memory_space<vmem>>, vector<1x4xf32>
    %11 = vector.broadcast %10 : vector<1x4xf32> to vector<64x4xf32>
    %12 = arith.addf %9, %11 : vector<64x4xf32>
    %c0_11 = arith.constant 0 : index
    %c0_12 = arith.constant 0 : index
    %13 = vector.load %arg6[%c0_11, %c0_12] : memref<64x4xf32, #tpu.memory_space<vmem>>, vector<64x4xf32>
    tpu.vector_store %arg6[%c0_11, %c0_12], %12 {strides = array<i32>} : memref<64x4xf32, #tpu.memory_space<vmem>>, vector<64x4xf32>,
    return
  }
  func.func @transform_0(%arg0: i32) -> (i32, i32) {
    %c0_i32 = arith.constant 0 : i32
    %c0_i32_0 = arith.constant 0 : i32
    return %arg0, %c0_i32 : i32, i32
  }
  func.func @transform_1(%arg0: i32) -> (i32, i32) {
    %c0_i32 = arith.constant 0 : i32
    %c0_i32_0 = arith.constant 0 : i32
    %c0_i32_1 = arith.constant 0 : i32
    return %c0_i32, %c0_i32_0 : i32, i32
  }
  func.func @transform_2(%arg0: i32) -> (i32, i32) {
    %c0_i32 = arith.constant 0 : i32
    %c0_i32_0 = arith.constant 0 : i32
    %c0_i32_1 = arith.constant 0 : i32
    return %c0_i32, %c0_i32_0 : i32, i32
  }
  func.func @transform_3(%arg0: i32) -> (i32, i32) {
    %c0_i32 = arith.constant 0 : i32
    %c0_i32_0 = arith.constant 0 : i32
    %c0_i32_1 = arith.constant 0 : i32
    return %c0_i32, %c0_i32_0 : i32, i32
  }
  func.func @transform_4(%arg0: i32) -> (i32, i32) {
    %c0_i32 = arith.constant 0 : i32
    %c0_i32_0 = arith.constant 0 : i32
    %c0_i32_1 = arith.constant 0 : i32
    return %c0_i32, %c0_i32_0 : i32, i32
  }
  func.func @transform_5(%arg0: i32) -> (i32, i32) {
    %c0_i32 = arith.constant 0 : i32
    %c0_i32_0 = arith.constant 0 : i32
    return %arg0, %c0_i32 : i32, i32
  }
}

</mosaic_0001>

<llo_original>
// kernel: mlp_forward_batched.1
$region0: #{mlp_forward_batched.1}
  #allocation0 [shape = 'u32[]', space=smem, size = 0x4, offset = 0x4, fixed_abs, tag = 'smem constant byte address 0x4 - core index']
  #allocation1 [shape = 'u32[144,128]{1,0:T(1,128)}', space=vmem, size = 0x12000, scoped, tag = 'internal scratch']
  %s0 = inlined_call_operand.vmem [shape: f32[256,16], index: 0, kind: input, shape index: {}]
  %s1 = inlined_call_operand.vmem [shape: f32[16,32], index: 1, kind: input, shape index: {}]
  %s2 = inlined_call_operand.vmem [shape: f32[1,32], index: 2, kind: input, shape index: {}]
  %s3 = inlined_call_operand.vmem [shape: f32[32,4], index: 3, kind: input, shape index: {}]
  %s4 = inlined_call_operand.vmem [shape: f32[1,4], index: 4, kind: input, shape index: {}]
  %s5 = inlined_call_operand.vmem [shape: f32[256,4], index: 5, kind: output, shape index: {}]
  %s6 = sld [smem:[#allocation0]]
  $region53: #{mlp_forward_batched.1} parent=0
    _
  %s8 = ssub.s32 1, %s6
  %s9 = scalar_select 0, %s8, %s6
  loop: start=0, step=1, limit=6
  $region2: #{mlp_forward_batched.1} parent=0 // loop_pre_header
    _
  $region3: #{mlp_forward_batched.1} parent=0 // loop_header
    %s11 = sphi 0, %s15
    %p12 = scmp.ge.s32.totalorder %s11, 6
    %s21 = sphi 0, %s23
    %s24 = sphi 0, %s21
    %s25 = sphi 0, %s24
    %s41 = sphi 0, %s25
    %s45 = sphi 0, %s45
    %s47 = sphi 0, %s45
    %s48 = sphi 0, %s47
    %s62 = sphi 0, %s48
    %s66 = sphi 0, %s66
    %s68 = sphi 0, %s66
    %s69 = sphi 0, %s68
    %s83 = sphi 0, %s69
    %s87 = sphi 0, %s87
    %s89 = sphi 0, %s87
    %s90 = sphi 0, %s89
    %s104 = sphi 0, %s90
    %s108 = sphi 0, %s108
    %s110 = sphi 0, %s108
    %s111 = sphi 0, %s110
    %s125 = sphi 0, %s111
    %s131 = sphi 0, %s133
    %s134 = sphi 0, %s131
    %s135 = sphi 0, %s134
    %s151 = sphi 0, %s135
  $region4: #{mlp_forward_batched.1} parent=0 // loop_header_branch
    %14 = sbr.rel (%p12) target = $region8
  $region5: #{mlp_forward_batched.1} parent=0 // loop_body
    %s16 = ssub.s32 %s11, 1
    %s17 = ssub.s32 %s11, 2
    %s18 = sadd.s32 %s11, 1
    %s19 = ssub.s32 %s11, %s18
    %p20 = scmp.eq.s32.totalorder %s19, 0
    %s22 = sadd.s32 %s21, 1
    %s23 = scalar_select %p20, %s21, %s22
    %p26 = pneg %p20
    %p27 = scmp.eq.s32.totalorder %s11, 3
    %p28 = por %p26, %p27
    %p29 = scmp.ne.s32.totalorder %s21, %s24
    %p30 = scmp.eq.s32.totalorder %s11, 0
    %p31 = por %p29, %p30
    %p32 = scmp.ne.s32.totalorder %s21, %s24
    %p33 = scmp.eq.s32.totalorder %s16, 3
    %p34 = por %p32, %p33
    %p35 = scmp.ne.s32.totalorder %s24, %s25
    %p36 = scmp.eq.s32.totalorder %s16, 0
    %p37 = por %p35, %p36
    %p38 = scmp.ne.s32.totalorder %s24, %s25
    %p39 = scmp.eq.s32.totalorder %s17, 3
    %p40 = por %p38, %p39
    %p42 = scmp.ne.s32.totalorder %s25, %s41
    %p43 = scmp.eq.s32.totalorder %s17, 0
    %p44 = por %p42, %p43
    %s46 = sadd.s32 %s45, 1
    %p49 = scmp.eq.s32.totalorder %s11, 3
    %p50 = scmp.ne.s32.totalorder %s45, %s47
    %p51 = scmp.eq.s32.totalorder %s11, 0
    %p52 = por %p50, %p51
    %p53 = scmp.ne.s32.totalorder %s45, %s47
    %p54 = scmp.eq.s32.totalorder %s16, 3
    %p55 = por %p53, %p54
    %p56 = scmp.ne.s32.totalorder %s47, %s48
    %p57 = scmp.eq.s32.totalorder %s16, 0
    %p58 = por %p56, %p57
    %p59 = scmp.ne.s32.totalorder %s47, %s48
    %p60 = scmp.eq.s32.totalorder %s17, 3
    %p61 = por %p59, %p60
    %p63 = scmp.ne.s32.totalorder %s48, %s62
    %p64 = scmp.eq.s32.totalorder %s17, 0
    %p65 = por %p63, %p64
    %s67 = sadd.s32 %s66, 1
    %p70 = scmp.eq.s32.totalorder %s11, 3
    %p71 = scmp.ne.s32.totalorder %s66, %s68
    %p72 = scmp.eq.s32.totalorder %s11, 0
    %p73 = por %p71, %p72
    %p74 = scmp.ne.s32.totalorder %s66, %s68
    %p75 = scmp.eq.s32.totalorder %s16, 3
    %p76 = por %p74, %p75
    %p77 = scmp.ne.s32.totalorder %s68, %s69
    %p78 = scmp.eq.s32.totalorder %s16, 0
    %p79 = por %p77, %p78
    %p80 = scmp.ne.s32.totalorder %s68, %s69
    %p81 = scmp.eq.s32.totalorder %s17, 3
    %p82 = por %p80, %p81
    %p84 = scmp.ne.s32.totalorder %s69, %s83
    %p85 = scmp.eq.s32.totalorder %s17, 0
    %p86 = por %p84, %p85
    %s88 = sadd.s32 %s87, 1
    %p91 = scmp.eq.s32.totalorder %s11, 3
    %p92 = scmp.ne.s32.totalorder %s87, %s89
    %p93 = scmp.eq.s32.totalorder %s11, 0
    %p94 = por %p92, %p93
    %p95 = scmp.ne.s32.totalorder %s87, %s89
    %p96 = scmp.eq.s32.totalorder %s16, 3
    %p97 = por %p95, %p96
    %p98 = scmp.ne.s32.totalorder %s89, %s90
    %p99 = scmp.eq.s32.totalorder %s16, 0
    %p100 = por %p98, %p99
    %p101 = scmp.ne.s32.totalorder %s89, %s90
    %p102 = scmp.eq.s32.totalorder %s17, 3
    %p103 = por %p101, %p102
    %p105 = scmp.ne.s32.totalorder %s90, %s104
    %p106 = scmp.eq.s32.totalorder %s17, 0
    %p107 = por %p105, %p106
    %s109 = sadd.s32 %s108, 1
    %p112 = scmp.eq.s32.totalorder %s11, 3
    %p113 = scmp.ne.s32.totalorder %s108, %s110
    %p114 = scmp.eq.s32.totalorder %s11, 0
    %p115 = por %p113, %p114
    %p116 = scmp.ne.s32.totalorder %s108, %s110
    %p117 = scmp.eq.s32.totalorder %s16, 3
    %p118 = por %p116, %p117
    %p119 = scmp.ne.s32.totalorder %s110, %s111
    %p120 = scmp.eq.s32.totalorder %s16, 0
    %p121 = por %p119, %p120
    %p122 = scmp.ne.s32.totalorder %s110, %s111
    %p123 = scmp.eq.s32.totalorder %s17, 3
    %p124 = por %p122, %p123
    %p126 = scmp.ne.s32.totalorder %s111, %s125
    %p127 = scmp.eq.s32.totalorder %s17, 0
    %p128 = por %p126, %p127
    %s129 = ssub.s32 %s11, %s18
    %p130 = scmp.eq.s32.totalorder %s129, 0
    %s132 = sadd.s32 %s131, 1
    %s133 = scalar_select %p130, %s131, %s132
    %p136 = pneg %p130
    %p137 = scmp.eq.s32.totalorder %s11, 3
    %p138 = por %p136, %p137
    %p139 = scmp.ne.s32.totalorder %s131, %s134
    %p140 = scmp.eq.s32.totalorder %s11, 0
    %p141 = por %p139, %p140
    %p142 = scmp.ne.s32.totalorder %s131, %s134
    %p143 = scmp.eq.s32.totalorder %s16, 3
    %p144 = por %p142, %p143
    %p145 = scmp.ne.s32.totalorder %s134, %s135
    %p146 = scmp.eq.s32.totalorder %s16, 0
    %p147 = por %p145, %p146
    %p148 = scmp.ne.s32.totalorder %s134, %s135
    %p149 = scmp.eq.s32.totalorder %s17, 3
    %p150 = por %p148, %p149
    %p152 = scmp.ne.s32.totalorder %s135, %s151
    %p153 = scmp.eq.s32.totalorder %s17, 0
    %p154 = por %p152, %p153
    %p155 = scmp.le.s32.totalorder 1, %s11
    %p156 = scmp.lt.s32.totalorder %s11, 5
    %p157 = pnand %p155, %p156
    %p158 = pneg %p157
    // Predicated region
    $region9: #{mlp_forward_batched.1} parent=5 // pred_check
      _
    $region10: #{mlp_forward_batched.1} parent=5 // pred_check_branch
      %160 = sbr.rel (%p157) target = $region12
    $region11: #{mlp_forward_batched.1} parent=5 // pred_region
      %s161 = ssub.s32 %s11, 1
      // Predicated region
      $region13: #{mlp_forward_batched.1} parent=11 // pred_check
        %p162 = pneg %p58
      $region14: #{mlp_forward_batched.1} parent=11 // pred_check_branch
        %164 = sbr.rel (%p162) target = $region16
      $region15: #{mlp_forward_batched.1} parent=11 // pred_region
        _
      $region16: #{mlp_forward_batched.1} parent=11 // pred_fallthru
        _
      // Predicated region
      $region17: #{mlp_forward_batched.1} parent=11 // pred_check
        %p165 = pneg %p79
      $region18: #{mlp_forward_batched.1} parent=11 // pred_check_branch
        %167 = sbr.rel (%p165) target = $region20
      $region19: #{mlp_forward_batched.1} parent=11 // pred_region
        _
      $region20: #{mlp_forward_batched.1} parent=11 // pred_fallthru
        _
      // Predicated region
      $region21: #{mlp_forward_batched.1} parent=11 // pred_check
        %p168 = pneg %p100
      $region22: #{mlp_forward_batched.1} parent=11 // pred_check_branch
        %170 = sbr.rel (%p168) target = $region24
      $region23: #{mlp_forward_batched.1} parent=11 // pred_region
        _
      $region24: #{mlp_forward_batched.1} parent=11 // pred_fallthru
        _
      // Predicated region
      $region25: #{mlp_forward_batched.1} parent=11 // pred_check
        %p171 = pneg %p121
      $region26: #{mlp_forward_batched.1} parent=11 // pred_check_branch
        %173 = sbr.rel (%p171) target = $region28
      $region27: #{mlp_forward_batched.1} parent=11 // pred_region
        _
      $region28: #{mlp_forward_batched.1} parent=11 // pred_fallthru
        _
    $region12: #{mlp_forward_batched.1} parent=5 // pred_fallthru
      _
    %p174 = scmp.lt.s32.totalorder %s11, 4
    // Predicated region
    $region29: #{mlp_forward_batched.1} parent=5 // pred_check
      %p175 = pneg %p174
    $region30: #{mlp_forward_batched.1} parent=5 // pred_check_branch
      %177 = sbr.rel (%p175) target = $region32
    $region31: #{mlp_forward_batched.1} parent=5 // pred_region
      // Predicated region
      $region33: #{mlp_forward_batched.1} parent=31 // pred_check
        %p178 = pneg %p31
      $region34: #{mlp_forward_batched.1} parent=31 // pred_check_branch
        %180 = sbr.rel (%p178) target = $region36
      $region35: #{mlp_forward_batched.1} parent=31 // pred_region
        %s181 = smul.u32 8, %s11
        %p182 = scmp.lt.s32.totalorder %s181, 31
        %s183 = scalar_select %p182, %s181, 31
        %s184 = smul.addr %s183, 8
        %s185 = scalar_lea.vmem %s0, %s184
        %s186 = smul.u32 8, %s11
      $region36: #{mlp_forward_batched.1} parent=31 // pred_fallthru
        _
    $region32: #{mlp_forward_batched.1} parent=5 // pred_fallthru
      _
    %p187 = scmp.le.s32.totalorder 1, %s11
    %p188 = scmp.lt.s32.totalorder %s11, 5
    %p189 = pnand %p187, %p188
    %p190 = pneg %p189
    // Predicated region
    $region37: #{mlp_forward_batched.1} parent=5 // pred_check
      _
    $region38: #{mlp_forward_batched.1} parent=5 // pred_check_branch
      %192 = sbr.rel (%p189) target = $region40
    $region39: #{mlp_forward_batched.1} parent=5 // pred_region
      %s193 = ssub.s32 %s11, 1
      %s194 = smul.u32 8, %s16
      %p195 = scmp.lt.s32.totalorder %s194, 31
      %s196 = scalar_select %p195, %s194, 31
      %s197 = smul.addr %s196, 8
      %s198 = scalar_lea.vmem %s0, %s197
      %p199 = pneg %p37
      %p200 = pneg %p34
      %p201 = pneg %p58
      %p202 = pneg %p55
      %p203 = pneg %p79
      %p204 = pneg %p76
      %p205 = pneg %p100
      %p206 = pneg %p97
      %p207 = pneg %p121
      %p208 = pneg %p118
      %p209 = pneg %p147
      %p210 = pneg %p144
      %s211 = smul.u32 8, %s16
      %p212 = scmp.lt.s32.totalorder %s211, 31
      %s213 = scalar_select %p212, %s211, 31
      %s214 = smul.addr %s213, 8
      %s215 = scalar_lea.vmem %s5, %s214
      %s216 = smul.u32 8, %s16
      %p217 = scmp.lt.s32.totalorder %s216, 31
      %s218 = scalar_select %p217, %s216, 31
      %s219 = smul.addr %s218, 8
      %s220 = scalar_lea.vmem %s0, %s219
      %s221 = smul.u32 8, %s16
      %s222 = smul.u32 8, %s16
      %p223 = scmp.lt.s32.totalorder %s222, 31
      %s224 = scalar_select %p223, %s222, 31
      %s225 = smul.addr %s224, 8
      %s226 = scalar_lea.vmem %s5, %s225
      %s227 = smul.u32 8, %s16
      %v228 = vld [vmem:[%s220] sm:$0xff]
      %v229 = vld [vmem:[%s220 + $0x8] sm:$0xff]
      %v230 = vld [vmem:[%s220 + $0x10] sm:$0xff]
      %v231 = vld [vmem:[%s220 + $0x18] sm:$0xff]
      %v232 = vld [vmem:[%s220 + $0x20] sm:$0xff]
      %v233 = vld [vmem:[%s220 + $0x28] sm:$0xff]
      %v234 = vld [vmem:[%s220 + $0x30] sm:$0xff]
      %v235 = vld [vmem:[%s220 + $0x38] sm:$0xff]
      %v236 = vld [vmem:[%s1] sm:$0xff]
      %v237 = vld [vmem:[%s1 + $0x8] sm:$0xff]
      %v238 = vld [vmem:[%s2] sm:$0x1]
      %v240 = vlaneseq
      %v241 = vshrl.u32 %v240, 7
      %v242 = vsub.s32 0, %v241
      %v243 = vrot.slane %v238, %v242
      %vm245 = vcmask 130048
      %v247 = vsel %vm245, %v228, 0
      %v250 = vsel %vm245, %v229, 0
      %v253 = vsel %vm245, %v230, 0
      %v256 = vsel %vm245, %v231, 0
      %v259 = vsel %vm245, %v232, 0
      %v262 = vsel %vm245, %v233, 0
      %v265 = vsel %vm245, %v234, 0
      %v268 = vsel %vm245, %v235, 0
      %270 = vmatprep.subr.mxu0 0.0
      %271 = vmatpush1.msra.mxu0 %v236
      %272 = vmatprep.subr.mxu0 0.0
      %273 = vmatpush1.msra.mxu0 %v237
      %274 = vmatprep.subr.mxu0 0.0
      %275 = vmatpush1.msra.mxu0 0.0
      %276 = vmatprep.subr.mxu0 0.0
      %277 = vmatpush1.msra.mxu0 0.0
      %278 = vmatprep.subr.mxu0 0.0
      %279 = vmatpush1.msra.mxu0 0.0
      %280 = vmatprep.subr.mxu0 0.0
      %281 = vmatpush1.msra.mxu0 0.0
      %282 = vmatprep.subr.mxu0 0.0
      %283 = vmatpush1.msra.mxu0 0.0
      %284 = vmatprep.subr.mxu0 0.0
      %285 = vmatpush1.msra.mxu0 0.0
      %286 = vmatprep.subr.mxu0 0.0
      %287 = vmatpush1.msra.mxu0 0.0
      %288 = vmatprep.subr.mxu0 0.0
      %289 = vmatpush1.msra.mxu0 0.0
      %290 = vmatprep.subr.mxu0 0.0
      %291 = vmatpush1.msra.mxu0 0.0
      %292 = vmatprep.subr.mxu0 0.0
      %293 = vmatpush1.msra.mxu0 0.0
      %294 = vmatprep.subr.mxu0 0.0
      %295 = vmatpush1.msra.mxu0 0.0
      %296 = vmatprep.subr.mxu0 0.0
      %297 = vmatpush1.msra.mxu0 0.0
      %298 = vmatprep.subr.mxu0 0.0
      %299 = vmatpush1.msra.mxu0 0.0
      %300 = vmatprep.subr.mxu0 0.0
      %301 = vmatpush1.msra.mxu0 0.0
      %302 = vmatprep.subr.mxu0 0.0
      %303 = vmatpush1.msra.mxu0 0.0
      %304 = vmatprep.subr.mxu0 0.0
      %305 = vmatpush1.msra.mxu0 0.0
      %306 = vmatprep.subr.mxu0 0.0
      %307 = vmatpush1.msra.mxu0 0.0
      %308 = vmatprep.subr.mxu0 0.0
      %309 = vmatpush1.msra.mxu0 0.0
      %310 = vmatprep.subr.mxu0 0.0
      %311 = vmatpush1.msra.mxu0 0.0
      %312 = vmatprep.subr.mxu0 0.0
      %313 = vmatpush1.msra.mxu0 0.0
      %314 = vmatprep.subr.mxu0 0.0
      %315 = vmatpush1.msra.mxu0 0.0
      %316 = vmatprep.subr.mxu0 0.0
      %317 = vmatpush1.msra.mxu0 0.0
      %318 = vmatprep.subr.mxu0 0.0
      %319 = vmatpush1.msra.mxu0 0.0
      %320 = vmatprep.subr.mxu0 0.0
      %321 = vmatpush1.msra.mxu0 0.0
      %322 = vmatprep.subr.mxu0 0.0
      %323 = vmatpush1.msra.mxu0 0.0
      %324 = vmatprep.subr.mxu0 0.0
      %325 = vmatpush1.msra.mxu0 0.0
      %326 = vmatprep.subr.mxu0 0.0
      %327 = vmatpush1.msra.mxu0 0.0
      %328 = vmatprep.subr.mxu0 0.0
      %329 = vmatpush1.msra.mxu0 0.0
      %330 = vmatprep.subr.mxu0 0.0
      %331 = vmatpush1.msra.mxu0 0.0
      %332 = vmatprep.subr.mxu0 0.0
      %333 = vmatpush1.msra.mxu0 0.0
      %334 = vmatprep.mubr.f32.mxu0 0.0
      %335 = vmatmul.mubr.f32.gmra.mrb[0].mxu0 %v247
      %v336 = vpop.f32.mrb[0].mxu0
      %v337 = vadd.f32 %v243, %v336
      %v338 = vpop.f32.mrb[0].mxu0
      %339 = vmatprep.mubr.f32.mxu0 0.0
      %340 = vmatmul.mubr.f32.gmra.mrb[0].mxu0 %v250
      %v341 = vpop.f32.mrb[0].mxu0
      %v342 = vadd.f32 %v243, %v341
      %v343 = vpop.f32.mrb[0].mxu0
      %344 = vmatprep.mubr.f32.mxu0 0.0
      %345 = vmatmul.mubr.f32.gmra.mrb[0].mxu0 %v253
      %v346 = vpop.f32.mrb[0].mxu0
      %v347 = vadd.f32 %v243, %v346
      %v348 = vpop.f32.mrb[0].mxu0
      %349 = vmatprep.mubr.f32.mxu0 0.0
      %350 = vmatmul.mubr.f32.gmra.mrb[0].mxu0 %v256
      %v351 = vpop.f32.mrb[0].mxu0
      %v352 = vadd.f32 %v243, %v351
      %v353 = vpop.f32.mrb[0].mxu0
      %354 = vmatprep.mubr.f32.mxu0 0.0
      %355 = vmatmul.mubr.f32.gmra.mrb[0].mxu0 %v259
      %v356 = vpop.f32.mrb[0].mxu0
      %v357 = vadd.f32 %v243, %v356
      %v358 = vpop.f32.mrb[0].mxu0
      %359 = vmatprep.mubr.f32.mxu0 0.0
      %360 = vmatmul.mubr.f32.gmra.mrb[0].mxu0 %v262
      %v361 = vpop.f32.mrb[0].mxu0
      %v362 = vadd.f32 %v243, %v361
      %v363 = vpop.f32.mrb[0].mxu0
      %364 = vmatprep.mubr.f32.mxu0 0.0
      %365 = vmatmul.mubr.f32.gmra.mrb[0].mxu0 %v265
      %v366 = vpop.f32.mrb[0].mxu0
      %v367 = vadd.f32 %v243, %v366
      %v368 = vpop.f32.mrb[0].mxu0
      %369 = vmatprep.mubr.f32.mxu0 0.0
      %370 = vmatmul.mubr.f32.gmra.mrb[0].mxu0 %v268
      %v371 = vpop.f32.mrb[0].mxu0
      %v372 = vadd.f32 %v243, %v371
      %v373 = vpop.f32.mrb[0].mxu0
      %374 = vdwg.mxu0
      %v375 = vmax.f32 %v337, 0.0
      %v376 = vmax.f32 %v342, 0.0
      %v377 = vmax.f32 %v347, 0.0
      %v378 = vmax.f32 %v352, 0.0
      %v379 = vmax.f32 %v357, 0.0
      %v380 = vmax.f32 %v362, 0.0
      %v381 = vmax.f32 %v367, 0.0
      %v382 = vmax.f32 %v372, 0.0
      %v383 = vld [vmem:[%s3] sm:$0xff]
      %v384 = vld [vmem:[%s3 + $0x8] sm:$0xff]
      %v385 = vld [vmem:[%s3 + $0x10] sm:$0xff]
      %v386 = vld [vmem:[%s3 + $0x18] sm:$0xff]
      %v387 = vld [vmem:[%s4] sm:$0x1]
      %v389 = vlaneseq
      %v390 = vshrl.u32 %v389, 7
      %v391 = vsub.s32 0, %v390
      %v392 = vrot.slane %v387, %v391
      %vm394 = vcmask 261120
      %v396 = vsel %vm394, %v375, 0
      %v399 = vsel %vm394, %v376, 0
      %v402 = vsel %vm394, %v377, 0
      %v405 = vsel %vm394, %v378, 0
      %v408 = vsel %vm394, %v379, 0
      %v411 = vsel %vm394, %v380, 0
      %v414 = vsel %vm394, %v381, 0
      %v417 = vsel %vm394, %v382, 0
      %419 = vmatprep.subr.mxu0 0.0
      %420 = vmatpush1.msra.mxu0 %v383
      %421 = vmatprep.subr.mxu0 0.0
      %422 = vmatpush1.msra.mxu0 %v384
      %423 = vmatprep.subr.mxu0 0.0
      %424 = vmatpush1.msra.mxu0 %v385
      %425 = vmatprep.subr.mxu0 0.0
      %426 = vmatpush1.msra.mxu0 %v386
      %427 = vmatprep.subr.mxu0 0.0
      %428 = vmatpush1.msra.mxu0 0.0
      %429 = vmatprep.subr.mxu0 0.0
      %430 = vmatpush1.msra.mxu0 0.0
      %431 = vmatprep.subr.mxu0 0.0
      %432 = vmatpush1.msra.mxu0 0.0
      %433 = vmatprep.subr.mxu0 0.0
      %434 = vmatpush1.msra.mxu0 0.0
      %435 = vmatprep.subr.mxu0 0.0
      %436 = vmatpush1.msra.mxu0 0.0
      %437 = vmatprep.subr.mxu0 0.0
      %438 = vmatpush1.msra.mxu0 0.0
      %439 = vmatprep.subr.mxu0 0.0
      %440 = vmatpush1.msra.mxu0 0.0
      %441 = vmatprep.subr.mxu0 0.0
      %442 = vmatpush1.msra.mxu0 0.0
      %443 = vmatprep.subr.mxu0 0.0
      %444 = vmatpush1.msra.mxu0 0.0
      %445 = vmatprep.subr.mxu0 0.0
      %446 = vmatpush1.msra.mxu0 0.0
      %447 = vmatprep.subr.mxu0 0.0
      %448 = vmatpush1.msra.mxu0 0.0
      %449 = vmatprep.subr.mxu0 0.0
      %450 = vmatpush1.msra.mxu0 0.0
      %451 = vmatprep.subr.mxu0 0.0
      %452 = vmatpush1.msra.mxu0 0.0
      %453 = vmatprep.subr.mxu0 0.0
      %454 = vmatpush1.msra.mxu0 0.0
      %455 = vmatprep.subr.mxu0 0.0
      %456 = vmatpush1.msra.mxu0 0.0
      %457 = vmatprep.subr.mxu0 0.0
      %458 = vmatpush1.msra.mxu0 0.0
      %459 = vmatprep.subr.mxu0 0.0
      %460 = vmatpush1.msra.mxu0 0.0
      %461 = vmatprep.subr.mxu0 0.0
      %462 = vmatpush1.msra.mxu0 0.0
      %463 = vmatprep.subr.mxu0 0.0
      %464 = vmatpush1.msra.mxu0 0.0
      %465 = vmatprep.subr.mxu0 0.0
      %466 = vmatpush1.msra.mxu0 0.0
      %467 = vmatprep.subr.mxu0 0.0
      %468 = vmatpush1.msra.mxu0 0.0
      %469 = vmatprep.subr.mxu0 0.0
      %470 = vmatpush1.msra.mxu0 0.0
      %471 = vmatprep.subr.mxu0 0.0
      %472 = vmatpush1.msra.mxu0 0.0
      %473 = vmatprep.subr.mxu0 0.0
      %474 = vmatpush1.msra.mxu0 0.0
      %475 = vmatprep.subr.mxu0 0.0
      %476 = vmatpush1.msra.mxu0 0.0
      %477 = vmatprep.subr.mxu0 0.0
      %478 = vmatpush1.msra.mxu0 0.0
      %479 = vmatprep.subr.mxu0 0.0
      %480 = vmatpush1.msra.mxu0 0.0
      %481 = vmatprep.subr.mxu0 0.0
      %482 = vmatpush1.msra.mxu0 0.0
      %483 = vmatprep.mubr.f32.mxu0 0.0
      %484 = vmatmul.mubr.f32.gmra.mrb[0].mxu0 %v396
      %v485 = vpop.f32.mrb[0].mxu0
      %v486 = vadd.f32 %v392, %v485
      %v487 = vpop.f32.mrb[0].mxu0
      %488 = vmatprep.mubr.f32.mxu0 0.0
      %489 = vmatmul.mubr.f32.gmra.mrb[0].mxu0 %v399
      %v490 = vpop.f32.mrb[0].mxu0
      %v491 = vadd.f32 %v392, %v490
      %v492 = vpop.f32.mrb[0].mxu0
      %493 = vmatprep.mubr.f32.mxu0 0.0
      %494 = vmatmul.mubr.f32.gmra.mrb[0].mxu0 %v402
      %v495 = vpop.f32.mrb[0].mxu0
      %v496 = vadd.f32 %v392, %v495
      %v497 = vpop.f32.mrb[0].mxu0
      %498 = vmatprep.mubr.f32.mxu0 0.0
      %499 = vmatmul.mubr.f32.gmra.mrb[0].mxu0 %v405
      %v500 = vpop.f32.mrb[0].mxu0
      %v501 = vadd.f32 %v392, %v500
      %v502 = vpop.f32.mrb[0].mxu0
      %503 = vmatprep.mubr.f32.mxu0 0.0
      %504 = vmatmul.mubr.f32.gmra.mrb[0].mxu0 %v408
      %v505 = vpop.f32.mrb[0].mxu0
      %v506 = vadd.f32 %v392, %v505
      %v507 = vpop.f32.mrb[0].mxu0
      %508 = vmatprep.mubr.f32.mxu0 0.0
      %509 = vmatmul.mubr.f32.gmra.mrb[0].mxu0 %v411
      %v510 = vpop.f32.mrb[0].mxu0
      %v511 = vadd.f32 %v392, %v510
      %v512 = vpop.f32.mrb[0].mxu0
      %513 = vmatprep.mubr.f32.mxu0 0.0
      %514 = vmatmul.mubr.f32.gmra.mrb[0].mxu0 %v414
      %v515 = vpop.f32.mrb[0].mxu0
      %v516 = vadd.f32 %v392, %v515
      %v517 = vpop.f32.mrb[0].mxu0
      %518 = vmatprep.mubr.f32.mxu0 0.0
      %519 = vmatmul.mubr.f32.gmra.mrb[0].mxu0 %v417
      %v520 = vpop.f32.mrb[0].mxu0
      %v521 = vadd.f32 %v392, %v520
      %v522 = vpop.f32.mrb[0].mxu0
      %523 = vdwg.mxu0
      %vm524 = vcmask 31744
      %525 = vst.msk [vmem:[%s226] sm:$0xff] %vm524, %v486
      %526 = vst.msk [vmem:[%s226 + $0x8] sm:$0xff] %vm524, %v491
      %527 = vst.msk [vmem:[%s226 + $0x10] sm:$0xff] %vm524, %v496
      %528 = vst.msk [vmem:[%s226 + $0x18] sm:$0xff] %vm524, %v501
      %529 = vst.msk [vmem:[%s226 + $0x20] sm:$0xff] %vm524, %v506
      %530 = vst.msk [vmem:[%s226 + $0x28] sm:$0xff] %vm524, %v511
      %531 = vst.msk [vmem:[%s226 + $0x30] sm:$0xff] %vm524, %v516
      %532 = vst.msk [vmem:[%s226 + $0x38] sm:$0xff] %vm524, %v521
      %s533 = smul.u32 8, %s16
      %p534 = scmp.lt.s32.totalorder %s533, 31
      %s535 = scalar_select %p534, %s533, 31
      %s536 = smul.addr %s535, 8
      %s537 = scalar_lea.vmem %s5, %s536
      // Predicated region
      $region41: #{mlp_forward_batched.1} parent=39 // pred_check
        %p538 = pneg %p144
      $region42: #{mlp_forward_batched.1} parent=39 // pred_check_branch
        %540 = sbr.rel (%p538) target = $region44
      $region43: #{mlp_forward_batched.1} parent=39 // pred_region
        %s541 = smul.u32 8, %s16
      $region44: #{mlp_forward_batched.1} parent=39 // pred_fallthru
        _
    $region40: #{mlp_forward_batched.1} parent=5 // pred_fallthru
      _
    %p542 = scmp.le.s32.totalorder 2, %s11
    // Predicated region
    $region45: #{mlp_forward_batched.1} parent=5 // pred_check
      %p543 = pneg %p542
    $region46: #{mlp_forward_batched.1} parent=5 // pred_check_branch
      %545 = sbr.rel (%p543) target = $region48
    $region47: #{mlp_forward_batched.1} parent=5 // pred_region
      %s546 = ssub.s32 %s11, 2
      // Predicated region
      $region49: #{mlp_forward_batched.1} parent=47 // pred_check
        %p547 = pneg %p150
      $region50: #{mlp_forward_batched.1} parent=47 // pred_check_branch
        %549 = sbr.rel (%p547) target = $region52
      $region51: #{mlp_forward_batched.1} parent=47 // pred_region
        %s550 = smul.u32 8, %s17
        %p551 = scmp.lt.s32.totalorder %s550, 31
        %s552 = scalar_select %p551, %s550, 31
        %s553 = smul.addr %s552, 8
        %s554 = scalar_lea.vmem %s5, %s553
      $region52: #{mlp_forward_batched.1} parent=47 // pred_fallthru
        _
    $region48: #{mlp_forward_batched.1} parent=5 // pred_fallthru
      _
  $region6: #{mlp_forward_batched.1} parent=0 // loop_footer
    %s15 = sadd.s32 1, %s11
  $region7: #{mlp_forward_batched.1} parent=0 // loop_footer_branch
    %10 = sbr.rel target = $region3
  $region8: #{mlp_forward_batched.1} parent=0 // loop_exit
    _

</llo_original>
